<compile_context>
chip_gen: v6e
topology: v6e:2x2x1
jax: 0.10.0
libtpu: 0.0.40
codegen_flags: <defaults>
</compile_context>

<pallas_src>
import functools

import numpy as np
import jax
import jax.numpy as jnp
from jax import lax
from jax.experimental import pallas as pl
from jax.experimental.pallas import tpu as pltpu

KS = 51     # Gaussian kernel size
STD = 3.0   # Gaussian std
PAD = 25    # F.conv2d padding


def _gaussian_1d_f64() -> np.ndarray:
    """Normalized 1D taps gn with outer(gn, gn) == the module's 2D kernel."""
    n = np.arange(KS, dtype=np.float64) - (KS - 1) / 2.0
    g = np.exp(-0.5 * (n / STD) ** 2)
    return g / g.sum()


@functools.lru_cache(maxsize=None)
def _band_matrix_np(n: int) -> np.ndarray:
    """M[a, b] = g[a - b + PAD] inside the 51-tap band, else 0.  Shape (n, n).

    Right-multiply for the horizontal pass (x @ M), left-multiply for the vertical
    pass (M @ x); the mask encodes conv2d's zero padding at the image boundary.
    Cached so it is built on the host only once per size.
    """
    g = _gaussian_1d_f64()
    d = np.arange(n)[:, None] - np.arange(n)[None, :] + PAD
    mask = (d >= 0) & (d < KS)
    return np.where(mask, g[np.clip(d, 0, KS - 1)], 0.0).astype(np.float32)


def _gaussian_kernel_2d_np() -> np.ndarray:
    """Replicates signal.gaussian(51, std=3) -> outer -> normalize (reference only)."""
    g = _gaussian_1d_f64()
    k2 = np.outer(g, g)
    return (k2 / k2.sum()).astype(np.float32)


def _blur_kernel(x_ref, ah_ref, av_ref, o_ref, h_ref, *, G, H, W):
    # x_ref : (G, H, W) bf16   G planes of one grid step
    # ah_ref: (W, W)    bf16   horizontal band matrix (resident, single copy)
    # av_ref: (H, H)    bf16   vertical band matrix   (resident, single copy)
    # o_ref : (G, H, W) f32
    # h_ref : (G, H, W) bf16   explicit VMEM staging of the horizontal-pass result
    #
    # Horizontal pass: all G planes folded into the MXU M dimension -> ONE matmul.
    xf = x_ref[...].reshape(G * H, W)            # free merge of leading dims (H % 8 == 0)
    h = jnp.dot(xf, ah_ref[...], preferred_element_type=jnp.float32)    # (G*H, W), f32 acc
    # Stage in bf16: the MXU rounds operands to bf16 at default precision anyway,
    # so this is numerically identical to f32 staging and halves scratch VMEM.
    h_ref[...] = h.reshape(G, H, W).astype(h_ref.dtype)

    av = av_ref[...]
    for g in range(G):                           # static unroll, G is small
        o_ref[g] = jnp.dot(av, h_ref[g],
                           preferred_element_type=jnp.float32).astype(o_ref.dtype)


def _pick_group(n_planes: int, h: int, w: int) -> int:
    """Planes per grid step: largest divisor of n_planes whose block fits a VMEM
    budget, preferring an even grid extent (v7x megacore)."""
    # bytes/element per plane in a step: x bf16 double-buffered (2*2) + out f32
    # double-buffered (2*4) + h scratch bf16 (2) = 14.
    budget = 12 * 1024 * 1024
    divisors = [g for g in range(1, n_planes + 1) if n_planes % g == 0]
    fits = [g for g in divisors if g * h * w * 14 <= budget] or [1]
    even = [g for g in fits if (n_planes // g) % 2 == 0]
    return max(even) if even else max(fits)


@jax.jit
def gaussian_blur(x: jax.Array) -> jax.Array:
    """x: float32 [B, 3, H, W] -> float32 [B, 3, H, W] (depthwise 51x51 Gaussian blur)."""
    B, C, H, W = x.shape
    n_planes = B * C
    G = _pick_group(n_planes, H, W)
    steps = n_planes // G

    # Band matrices: built once per size on the host (lru_cache), embedded as bf16
    # constants -> uploaded once per compilation, half the VMEM of f32.
    a_h = jnp.asarray(_band_matrix_np(W), dtype=jnp.bfloat16)   # (W, W)
    a_v = jnp.asarray(_band_matrix_np(H), dtype=jnp.bfloat16)   # (H, H)

    # bf16 matmul operands: identical MXU numerics at default precision, half the
    # HBM DMA bytes and half the VMEM for the x blocks (kernel is memory-bound).
    x2 = x.reshape(n_planes, H, W).astype(jnp.bfloat16)

    kernel = functools.partial(_blur_kernel, G=G, H=H, W=W)

    blk = G * H * W
    vmem_est = (2 * blk * 2                 # x blocks (bf16, double-buffered)
                + 2 * blk * 4               # out blocks (f32, double-buffered)
                + blk * 2                   # h scratch (bf16)
                + (H * H + W * W) * 2       # band matrices (bf16, single copy)
                + (2 << 20))                # headroom for Mosaic internal scratch
    vmem_limit = int(min(64 * 2**20, max(32 * 2**20, vmem_est)))

    out = pl.pallas_call(
        kernel,
        out_shape=jax.ShapeDtypeStruct((n_planes, H, W), x.dtype),
        grid=(steps,),
        in_specs=[
            pl.BlockSpec((G, H, W), lambda i: (i, 0, 0)),
            # Whole-array VMEM residency: constants are copied in once and are NOT
            # double-buffered by the grid pipeline.
            pl.BlockSpec(memory_space=pltpu.MemorySpace.VMEM),
            pl.BlockSpec(memory_space=pltpu.MemorySpace.VMEM),
        ],
        out_specs=pl.BlockSpec((G, H, W), lambda i: (i, 0, 0)),
        scratch_shapes=[pltpu.VMEM((G, H, W), jnp.bfloat16)],
        compiler_params=pltpu.CompilerParams(
            dimension_semantics=("parallel",),
            vmem_limit_bytes=vmem_limit),
    )(x2, a_h, a_v)

    return out.reshape(B, C, H, W)


if __name__ == "__main__":
    B, C, H, W = 2, 3, 16, 16
    key = jax.random.PRNGKey(0)
    x = jax.random.uniform(key, (B, C, H, W), dtype=jnp.float32)   # RGB image in [0, 1]

    out = jax.block_until_ready(gaussian_blur(x))
    assert out.shape == (B, C, H, W) and out.dtype == jnp.float32

    # Reference: depthwise conv (same semantics as F.conv2d with groups=3), computed at
    # HIGHEST precision so the reference itself is not bf16-rounded.
    k2d = jnp.asarray(_gaussian_kernel_2d_np())
    w = jnp.broadcast_to(k2d[None, None, :, :], (3, 1, KS, KS))
    ref = lax.conv_general_dilated(
        x, w, window_strides=(1, 1), padding=((PAD, PAD), (PAD, PAD)),
        feature_group_count=3, dimension_numbers=("NCHW", "OIHW", "NCHW"),
        precision=lax.Precision.HIGHEST)
    # Tolerance relaxed for bf16 matmul operands (values are O(0.1 - 1)).
    np.testing.assert_allclose(np.asarray(out), np.asarray(ref), rtol=3e-2, atol=3e-3)

    print("KERNEL_OK")
</pallas_src>

<mosaic_0001>
module attributes {stable_mosaic.version = 11 : i64} {
  func.func @_blur_kernel(%arg0: i32, %arg1: memref<3x16x16xbf16, #tpu.memory_space<vmem>>, %arg2: memref<16x16xbf16, #tpu.memory_space<vmem>>, %arg3: memref<16x16xbf16, #tpu.memory_space<vmem>>, %arg4: memref<3x16x16xf32, #tpu.memory_space<vmem>>, %arg5: memref<3x16x16xbf16, #tpu.memory_space<vmem>>) attributes {dimension_semantics = [#tpu.dimension_semantics<parallel>], iteration_bounds = array<i64: 2>, scalar_prefetch = 0 : i64, scratch_operands = 1 : i64, tpu.core_type = #tpu.core_type<tc>, window_params = [{transform_indices = @transform_0, window_bounds = array<i64: 3, 16, 16>}, {pipeline_mode = #tpu.pipeline_mode<synchronous>, transform_indices = @transform_1, window_bounds = array<i64: 16, 16>}, {pipeline_mode = #tpu.pipeline_mode<synchronous>, transform_indices = @transform_2, window_bounds = array<i64: 16, 16>}, {transform_indices = @transform_3, window_bounds = array<i64: 3, 16, 16>}]} {
    %c0 = arith.constant 0 : index
    %c0_0 = arith.constant 0 : index
    %c0_1 = arith.constant 0 : index
    %0 = vector.load %arg1[%c0, %c0_0, %c0_1] : memref<3x16x16xbf16, #tpu.memory_space<vmem>>, vector<3x16x16xbf16>
    %1 = vector.shape_cast %0 : vector<3x16x16xbf16> to vector<48x16xbf16>
    %c0_2 = arith.constant 0 : index
    %c0_3 = arith.constant 0 : index
    %2 = vector.load %arg2[%c0_2, %c0_3] : memref<16x16xbf16, #tpu.memory_space<vmem>>, vector<16x16xbf16>
    %cst = arith.constant dense<0.000000e+00> : vector<48x16xf32>
    %3 = tpu.matmul %1, %2, %cst {dimension_numbers = #tpu.dot_dimension_numbers<[1], [0], [0], [1], [0, 0, 1, 1], [], []>} : vector<48x16xbf16>, vector<16x16xbf16>, vector<48x16xf32> -> vector<48x16xf32>
    %4 = vector.shape_cast %3 : vector<48x16xf32> to vector<3x16x16xf32>
    %5 = arith.truncf %4 : vector<3x16x16xf32> to vector<3x16x16xbf16>
    %c0_4 = arith.constant 0 : index
    %c0_5 = arith.constant 0 : index
    %c0_6 = arith.constant 0 : index
    %6 = vector.load %arg5[%c0_4, %c0_5, %c0_6] : memref<3x16x16xbf16, #tpu.memory_space<vmem>>, vector<3x16x16xbf16>
    tpu.vector_store %arg5[%c0_4, %c0_5, %c0_6], %5 {strides = array<i32>} : memref<3x16x16xbf16, #tpu.memory_space<vmem>>, vector<3x16x16xbf16>,
    %c0_7 = arith.constant 0 : index
    %c0_8 = arith.constant 0 : index
    %7 = vector.load %arg3[%c0_7, %c0_8] : memref<16x16xbf16, #tpu.memory_space<vmem>>, vector<16x16xbf16>
    %c0_9 = arith.constant 0 : index
    %c0_10 = arith.constant 0 : index
    %c0_11 = arith.constant 0 : index
    %8 = vector.load %arg5[%c0_9, %c0_10, %c0_11] : memref<3x16x16xbf16, #tpu.memory_space<vmem>>, vector<1x16x16xbf16>
    %9 = vector.shape_cast %8 : vector<1x16x16xbf16> to vector<16x16xbf16>
    %cst_12 = arith.constant dense<0.000000e+00> : vector<16x16xf32>
    %10 = tpu.matmul %7, %9, %cst_12 {dimension_numbers = #tpu.dot_dimension_numbers<[1], [0], [0], [1], [0, 0, 1, 1], [], []>} : vector<16x16xbf16>, vector<16x16xbf16>, vector<16x16xf32> -> vector<16x16xf32>
    %c0_13 = arith.constant 0 : index
    %c0_14 = arith.constant 0 : index
    %c0_15 = arith.constant 0 : index
    %11 = vector.load %arg4[%c0_13, %c0_14, %c0_15] : memref<3x16x16xf32, #tpu.memory_space<vmem>>, vector<1x16x16xf32>
    %12 = vector.shape_cast %11 : vector<1x16x16xf32> to vector<16x16xf32>
    %13 = vector.shape_cast %10 : vector<16x16xf32> to vector<1x16x16xf32>
    tpu.vector_store %arg4[%c0_13, %c0_14, %c0_15], %13 {strides = array<i32>} : memref<3x16x16xf32, #tpu.memory_space<vmem>>, vector<1x16x16xf32>,
    %c1 = arith.constant 1 : index
    %c0_16 = arith.constant 0 : index
    %c0_17 = arith.constant 0 : index
    %14 = vector.load %arg5[%c1, %c0_16, %c0_17] : memref<3x16x16xbf16, #tpu.memory_space<vmem>>, vector<1x16x16xbf16>
    %15 = vector.shape_cast %14 : vector<1x16x16xbf16> to vector<16x16xbf16>
    %cst_18 = arith.constant dense<0.000000e+00> : vector<16x16xf32>
    %16 = tpu.matmul %7, %15, %cst_18 {dimension_numbers = #tpu.dot_dimension_numbers<[1], [0], [0], [1], [0, 0, 1, 1], [], []>} : vector<16x16xbf16>, vector<16x16xbf16>, vector<16x16xf32> -> vector<16x16xf32>
    %c1_19 = arith.constant 1 : index
    %c0_20 = arith.constant 0 : index
    %c0_21 = arith.constant 0 : index
    %17 = vector.load %arg4[%c1_19, %c0_20, %c0_21] : memref<3x16x16xf32, #tpu.memory_space<vmem>>, vector<1x16x16xf32>
    %18 = vector.shape_cast %17 : vector<1x16x16xf32> to vector<16x16xf32>
    %19 = vector.shape_cast %16 : vector<16x16xf32> to vector<1x16x16xf32>
    tpu.vector_store %arg4[%c1_19, %c0_20, %c0_21], %19 {strides = array<i32>} : memref<3x16x16xf32, #tpu.memory_space<vmem>>, vector<1x16x16xf32>,
    %c2 = arith.constant 2 : index
    %c0_22 = arith.constant 0 : index
    %c0_23 = arith.constant 0 : index
    %20 = vector.load %arg5[%c2, %c0_22, %c0_23] : memref<3x16x16xbf16, #tpu.memory_space<vmem>>, vector<1x16x16xbf16>
    %21 = vector.shape_cast %20 : vector<1x16x16xbf16> to vector<16x16xbf16>
    %cst_24 = arith.constant dense<0.000000e+00> : vector<16x16xf32>
    %22 = tpu.matmul %7, %21, %cst_24 {dimension_numbers = #tpu.dot_dimension_numbers<[1], [0], [0], [1], [0, 0, 1, 1], [], []>} : vector<16x16xbf16>, vector<16x16xbf16>, vector<16x16xf32> -> vector<16x16xf32>
    %c2_25 = arith.constant 2 : index
    %c0_26 = arith.constant 0 : index
    %c0_27 = arith.constant 0 : index
    %23 = vector.load %arg4[%c2_25, %c0_26, %c0_27] : memref<3x16x16xf32, #tpu.memory_space<vmem>>, vector<1x16x16xf32>
    %24 = vector.shape_cast %23 : vector<1x16x16xf32> to vector<16x16xf32>
    %25 = vector.shape_cast %22 : vector<16x16xf32> to vector<1x16x16xf32>
    tpu.vector_store %arg4[%c2_25, %c0_26, %c0_27], %25 {strides = array<i32>} : memref<3x16x16xf32, #tpu.memory_space<vmem>>, vector<1x16x16xf32>,
    return
  }
  func.func @transform_0(%arg0: i32) -> (i32, i32, i32) {
    %c0_i32 = arith.constant 0 : i32
    %c0_i32_0 = arith.constant 0 : i32
    %c0_i32_1 = arith.constant 0 : i32
    return %arg0, %c0_i32, %c0_i32_0 : i32, i32, i32
  }
  func.func @transform_1(%arg0: i32) -> (i32, i32) {
    %c0_i32 = arith.constant 0 : i32
    %c0_i32_0 = arith.constant 0 : i32
    %c0_i32_1 = arith.constant 0 : i32
    return %c0_i32, %c0_i32_0 : i32, i32
  }
  func.func @transform_2(%arg0: i32) -> (i32, i32) {
    %c0_i32 = arith.constant 0 : i32
    %c0_i32_0 = arith.constant 0 : i32
    %c0_i32_1 = arith.constant 0 : i32
    return %c0_i32, %c0_i32_0 : i32, i32
  }
  func.func @transform_3(%arg0: i32) -> (i32, i32, i32) {
    %c0_i32 = arith.constant 0 : i32
    %c0_i32_0 = arith.constant 0 : i32
    %c0_i32_1 = arith.constant 0 : i32
    return %arg0, %c0_i32, %c0_i32_0 : i32, i32, i32
  }
}

</mosaic_0001>

<llo_original>
// kernel: gaussian_blur.1
$region0: #{gaussian_blur.1}
  #allocation0 [shape = 'u32[]', space=smem, size = 0x4, offset = 0x4, fixed_abs, tag = 'smem constant byte address 0x4 - core index']
  #allocation1 [shape = 'u32[144,128]{1,0:T(1,128)}', space=vmem, size = 0x12000, scoped, tag = 'internal scratch']
  #allocation2 [shape = 'bf16[3,16,16]{2,1,0:T(8,128)(2,1)}', space=vmem, size = 0x3000, scoped, tag = 'scratch operand']
  %s0 = inlined_call_operand.vmem [shape: bf16[6,16,16], index: 0, kind: input, shape index: {}]
  %s1 = inlined_call_operand.vmem [shape: bf16[16,16], index: 1, kind: input, shape index: {}, may-alias: {1,2}]
  %s2 = inlined_call_operand.vmem [shape: bf16[16,16], index: 2, kind: input, shape index: {}, may-alias: {1,2}]
  %s3 = inlined_call_operand.hbm [shape: f32[6,16,16], index: 3, kind: output, shape index: {}]
  %s4 = sld [smem:[#allocation0]]
  $region45: #{gaussian_blur.1} parent=0
    _
  %s6 = ssub.s32 1, %s4
  %s7 = scalar_select 0, %s6, %s4
  $region1: #{gaussian_blur.1} parent=0
    #allocation3 [shape = 'u8[49152]{0}', space=vmem, size = 0xc000, scoped, tag = 'output window, operand 0']
    #allocation4 [shape = 's32[2]{0}', space=sflag, size = 0x8, scoped, tag = 'scoped memory for gaussian_blur.1']
    %8 = vsyncpa [#allocation4], 0
    %s9 = scalar_lea.sflag [#allocation4], 1
    %10 = vsyncpa %s9, 0
    loop: start=0, step=1, limit=4
    $region2: #{gaussian_blur.1} parent=1 // loop_pre_header
      _
    $region3: #{gaussian_blur.1} parent=1 // loop_header
      %s12 = sphi 0, %s16
      %p13 = scmp.ge.s32.totalorder %s12, 4
      %s22 = sphi 0, %s24
      %s25 = sphi 0, %s22
      %s26 = sphi 0, %s25
      %s42 = sphi 0, %s26
      %s46 = sphi 0, %s46
      %s48 = sphi 0, %s46
      %s49 = sphi 0, %s48
      %s63 = sphi 0, %s49
      %s67 = sphi 0, %s67
      %s69 = sphi 0, %s67
      %s70 = sphi 0, %s69
      %s84 = sphi 0, %s70
      %s90 = sphi 0, %s92
      %s93 = sphi 0, %s90
      %s94 = sphi 0, %s93
      %s110 = sphi 0, %s94
    $region4: #{gaussian_blur.1} parent=1 // loop_header_branch
      %15 = sbr.rel (%p13) target = $region8
    $region5: #{gaussian_blur.1} parent=1 // loop_body
      %s17 = ssub.s32 %s12, 1
      %s18 = ssub.s32 %s12, 2
      %s19 = sadd.s32 %s12, 1
      %s20 = ssub.s32 %s12, %s19
      %p21 = scmp.eq.s32.totalorder %s20, 0
      %s23 = sadd.s32 %s22, 1
      %s24 = scalar_select %p21, %s22, %s23
      %p27 = pneg %p21
      %p28 = scmp.eq.s32.totalorder %s12, 1
      %p29 = por %p27, %p28
      %p30 = scmp.ne.s32.totalorder %s22, %s25
      %p31 = scmp.eq.s32.totalorder %s12, 0
      %p32 = por %p30, %p31
      %p33 = scmp.ne.s32.totalorder %s22, %s25
      %p34 = scmp.eq.s32.totalorder %s17, 1
      %p35 = por %p33, %p34
      %p36 = scmp.ne.s32.totalorder %s25, %s26
      %p37 = scmp.eq.s32.totalorder %s17, 0
      %p38 = por %p36, %p37
      %p39 = scmp.ne.s32.totalorder %s25, %s26
      %p40 = scmp.eq.s32.totalorder %s18, 1
      %p41 = por %p39, %p40
      %p43 = scmp.ne.s32.totalorder %s26, %s42
      %p44 = scmp.eq.s32.totalorder %s18, 0
      %p45 = por %p43, %p44
      %s47 = sadd.s32 %s46, 1
      %p50 = scmp.eq.s32.totalorder %s12, 1
      %p51 = scmp.ne.s32.totalorder %s46, %s48
      %p52 = scmp.eq.s32.totalorder %s12, 0
      %p53 = por %p51, %p52
      %p54 = scmp.ne.s32.totalorder %s46, %s48
      %p55 = scmp.eq.s32.totalorder %s17, 1
      %p56 = por %p54, %p55
      %p57 = scmp.ne.s32.totalorder %s48, %s49
      %p58 = scmp.eq.s32.totalorder %s17, 0
      %p59 = por %p57, %p58
      %p60 = scmp.ne.s32.totalorder %s48, %s49
      %p61 = scmp.eq.s32.totalorder %s18, 1
      %p62 = por %p60, %p61
      %p64 = scmp.ne.s32.totalorder %s49, %s63
      %p65 = scmp.eq.s32.totalorder %s18, 0
      %p66 = por %p64, %p65
      %s68 = sadd.s32 %s67, 1
      %p71 = scmp.eq.s32.totalorder %s12, 1
      %p72 = scmp.ne.s32.totalorder %s67, %s69
      %p73 = scmp.eq.s32.totalorder %s12, 0
      %p74 = por %p72, %p73
      %p75 = scmp.ne.s32.totalorder %s67, %s69
      %p76 = scmp.eq.s32.totalorder %s17, 1
      %p77 = por %p75, %p76
      %p78 = scmp.ne.s32.totalorder %s69, %s70
      %p79 = scmp.eq.s32.totalorder %s17, 0
      %p80 = por %p78, %p79
      %p81 = scmp.ne.s32.totalorder %s69, %s70
      %p82 = scmp.eq.s32.totalorder %s18, 1
      %p83 = por %p81, %p82
      %p85 = scmp.ne.s32.totalorder %s70, %s84
      %p86 = scmp.eq.s32.totalorder %s18, 0
      %p87 = por %p85, %p86
      %s88 = ssub.s32 %s12, %s19
      %p89 = scmp.eq.s32.totalorder %s88, 0
      %s91 = sadd.s32 %s90, 1
      %s92 = scalar_select %p89, %s90, %s91
      %p95 = pneg %p89
      %p96 = scmp.eq.s32.totalorder %s12, 1
      %p97 = por %p95, %p96
      %p98 = scmp.ne.s32.totalorder %s90, %s93
      %p99 = scmp.eq.s32.totalorder %s12, 0
      %p100 = por %p98, %p99
      %p101 = scmp.ne.s32.totalorder %s90, %s93
      %p102 = scmp.eq.s32.totalorder %s17, 1
      %p103 = por %p101, %p102
      %p104 = scmp.ne.s32.totalorder %s93, %s94
      %p105 = scmp.eq.s32.totalorder %s17, 0
      %p106 = por %p104, %p105
      %p107 = scmp.ne.s32.totalorder %s93, %s94
      %p108 = scmp.eq.s32.totalorder %s18, 1
      %p109 = por %p107, %p108
      %p111 = scmp.ne.s32.totalorder %s94, %s110
      %p112 = scmp.eq.s32.totalorder %s18, 0
      %p113 = por %p111, %p112
      %p114 = scmp.le.s32.totalorder 1, %s12
      %p115 = scmp.lt.s32.totalorder %s12, 3
      %p116 = pnand %p114, %p115
      %p117 = pneg %p116
      // Predicated region
      $region9: #{gaussian_blur.1} parent=5 // pred_check
        _
      $region10: #{gaussian_blur.1} parent=5 // pred_check_branch
        %119 = sbr.rel (%p116) target = $region12
      $region11: #{gaussian_blur.1} parent=5 // pred_region
        %s120 = ssub.s32 %s12, 1
        // Predicated region
        $region13: #{gaussian_blur.1} parent=11 // pred_check
          %p121 = pneg %p59
        $region14: #{gaussian_blur.1} parent=11 // pred_check_branch
          %123 = sbr.rel (%p121) target = $region16
        $region15: #{gaussian_blur.1} parent=11 // pred_region
          _
        $region16: #{gaussian_blur.1} parent=11 // pred_fallthru
          _
        // Predicated region
        $region17: #{gaussian_blur.1} parent=11 // pred_check
          %p124 = pneg %p80
        $region18: #{gaussian_blur.1} parent=11 // pred_check_branch
          %126 = sbr.rel (%p124) target = $region20
        $region19: #{gaussian_blur.1} parent=11 // pred_region
          _
        $region20: #{gaussian_blur.1} parent=11 // pred_fallthru
          _
      $region12: #{gaussian_blur.1} parent=5 // pred_fallthru
        _
      %p127 = scmp.lt.s32.totalorder %s12, 2
      // Predicated region
      $region21: #{gaussian_blur.1} parent=5 // pred_check
        %p128 = pneg %p127
      $region22: #{gaussian_blur.1} parent=5 // pred_check_branch
        %130 = sbr.rel (%p128) target = $region24
      $region23: #{gaussian_blur.1} parent=5 // pred_region
        // Predicated region
        $region25: #{gaussian_blur.1} parent=23 // pred_check
          %p131 = pneg %p32
        $region26: #{gaussian_blur.1} parent=23 // pred_check_branch
          %133 = sbr.rel (%p131) target = $region28
        $region27: #{gaussian_blur.1} parent=23 // pred_region
          %s134 = smul.u32 3, %s12
          %p135 = scmp.lt.s32.totalorder %s134, 5
          %s136 = scalar_select %p135, %s134, 5
          %s137 = smul.addr %s136, 2
          %s138 = smul.addr %s137, 4
          %s139 = scalar_lea.vmem %s0, %s138
          %s140 = smul.u32 3, %s12
        $region28: #{gaussian_blur.1} parent=23 // pred_fallthru
          _
      $region24: #{gaussian_blur.1} parent=5 // pred_fallthru
        _
      %p141 = scmp.le.s32.totalorder 1, %s12
      %p142 = scmp.lt.s32.totalorder %s12, 3
      %p143 = pnand %p141, %p142
      %p144 = pneg %p143
      // Predicated region
      $region29: #{gaussian_blur.1} parent=5 // pred_check
        _
      $region30: #{gaussian_blur.1} parent=5 // pred_check_branch
        %146 = sbr.rel (%p143) target = $region32
      $region31: #{gaussian_blur.1} parent=5 // pred_region
        %s147 = ssub.s32 %s12, 1
        %s148 = smul.u32 3, %s17
        %p149 = scmp.lt.s32.totalorder %s148, 5
        %s150 = scalar_select %p149, %s148, 5
        %s151 = smul.addr %s150, 2
        %s152 = smul.addr %s151, 4
        %s153 = scalar_lea.vmem %s0, %s152
        %p154 = pneg %p38
        %p155 = pneg %p35
        %p156 = pneg %p59
        %p157 = pneg %p56
        %p158 = pneg %p80
        %p159 = pneg %p77
        %p160 = pneg %p106
        %p161 = pneg %p103
        %s162 = sand.u32 %s93, 1
        %s163 = scalar_lea.sflag [#allocation4], %s162
        %s164 = sand.u32 %s93, 1
        %s165 = smul.addr %s164, 48
        %s166 = scalar_lea.vmem [#allocation3], %s165
        %s167 = smul.u32 3, %s17
        %p168 = scmp.lt.s32.totalorder %s167, 5
        %s169 = scalar_select %p168, %s167, 5
        %s170 = smul.addr %s169, 2
        %s171 = smul.addr %s170, 4
        %s172 = scalar_lea.vmem %s0, %s171
        %s173 = smul.u32 3, %s17
        %s174 = smul.u32 3, %s17
        %v176 = vld [vmem:[%s172] sm:$0xf]
        %v177 = vld [vmem:[%s172 + $0x4] sm:$0xf]
        %v178 = vld [vmem:[%s172 + $0x8] sm:$0xf]
        %v179 = vld [vmem:[%s172 + $0xc] sm:$0xf]
        %v180 = vld [vmem:[%s172 + $0x10] sm:$0xf]
        %v181 = vld [vmem:[%s172 + $0x14] sm:$0xf]
        %v182 = vld [vmem:[%s1] sm:$0xf]
        %v183 = vld [vmem:[%s1 + $0x4] sm:$0xf]
        %v190 = vunpack.c.l.b16 %v176
        %v191 = vunpack.c.l.b16 %v177
        %v192 = vunpack.c.l.b16 %v178
        %v193 = vunpack.c.l.b16 %v179
        %v194 = vunpack.c.l.b16 %v180
        %v195 = vunpack.c.l.b16 %v181
        %v196 = vpack.c.b16 %v191, %v190
        %v197 = vpack.c.b16 %v193, %v192
        %v198 = vpack.c.b16 %v195, %v194
        %v201 = vunpack.c.l.b16 %v182
        %v202 = vunpack.c.l.b16 %v183
        %v203 = vpack.c.b16 %v202, %v201
        %vm205 = vcmask 130048
        %v207 = vsel %vm205, %v196, 0
        %v210 = vsel %vm205, %v197, 0
        %v213 = vsel %vm205, %v198, 0
        %215 = vmatprep.subr.bf16.mxu0 0
        %216 = vmatpush1.bf16.msra.mxu0 0
        %217 = vmatprep.subr.bf16.mxu0 0
        %218 = vmatpush1.bf16.msra.mxu0 0
        %219 = vmatprep.subr.bf16.mxu0 0
        %220 = vmatpush1.bf16.msra.mxu0 0
        %221 = vmatprep.subr.bf16.mxu0 0
        %222 = vmatpush1.bf16.msra.mxu0 0
        %223 = vmatprep.subr.bf16.mxu0 0
        %224 = vmatpush1.bf16.msra.mxu0 0
        %225 = vmatprep.subr.bf16.mxu0 0
        %226 = vmatpush1.bf16.msra.mxu0 0
        %227 = vmatprep.subr.bf16.mxu0 0
        %228 = vmatpush1.bf16.msra.mxu0 0
        %229 = vmatprep.subr.bf16.mxu0 0
        %230 = vmatpush1.bf16.msra.mxu0 %v203
        %231 = vmatprep.subr.bf16.mxu0 0
        %232 = vmatpush2.bf16.msra.mxu0 0
        %233 = vmatprep.subr.bf16.mxu0 0
        %234 = vmatpush2.bf16.msra.mxu0 0
        %235 = vmatprep.subr.bf16.mxu0 0
        %236 = vmatpush2.bf16.msra.mxu0 0
        %237 = vmatprep.subr.bf16.mxu0 0
        %238 = vmatpush2.bf16.msra.mxu0 0
        %239 = vmatprep.subr.bf16.mxu0 0
        %240 = vmatpush2.bf16.msra.mxu0 0
        %241 = vmatprep.subr.bf16.mxu0 0
        %242 = vmatpush2.bf16.msra.mxu0 0
        %243 = vmatprep.subr.bf16.mxu0 0
        %244 = vmatpush2.bf16.msra.mxu0 0
        %245 = vmatprep.subr.bf16.mxu0 0
        %246 = vmatpush2.bf16.msra.mxu0 0
        %247 = vmatprep.mubr.bf16.mxu0 0
        %248 = vmatmul.mubr.bf16.gmra.mxu0 %v207
        %v249 = vpop.f32.mrf.mxu0
        %v250 = vadd.f32 0.0, %v249
        %v251 = vpop.f32.mrf.mxu0
        %v252 = vpop.f32.mrf.mxu0
        %v253 = vadd.f32 0.0, %v252
        %v254 = vpop.f32.mrf.mxu0
        %255 = vmatprep.mubr.bf16.mxu0 0
        %256 = vmatmul.mubr.bf16.gmra.mxu0 %v210
        %v257 = vpop.f32.mrf.mxu0
        %v258 = vadd.f32 0.0, %v257
        %v259 = vpop.f32.mrf.mxu0
        %v260 = vpop.f32.mrf.mxu0
        %v261 = vadd.f32 0.0, %v260
        %v262 = vpop.f32.mrf.mxu0
        %263 = vmatprep.mubr.bf16.mxu0 0
        %264 = vmatmul.mubr.bf16.gmra.mxu0 %v213
        %v265 = vpop.f32.mrf.mxu0
        %v266 = vadd.f32 0.0, %v265
        %v267 = vpop.f32.mrf.mxu0
        %v268 = vpop.f32.mrf.mxu0
        %v269 = vadd.f32 0.0, %v268
        %v270 = vpop.f32.mrf.mxu0
        %271 = vdwg.mxu0
        %v272 = vpack.c.bf16 %v253, %v250
        %v273 = vpack.c.bf16 %v261, %v258
        %v274 = vpack.c.bf16 %v269, %v266
        %v278 = vunpack.c.l.b16 %v272
        %v279 = vunpack.c.h.b16 %v272
        %v280 = vunpack.c.l.b16 %v273
        %v281 = vunpack.c.h.b16 %v273
        %v282 = vunpack.c.l.b16 %v274
        %v283 = vunpack.c.h.b16 %v274
        %v284 = vpack.c.b16 %v278, %v278
        %v285 = vpack.c.b16 %v279, %v279
        %v286 = vpack.c.b16 %v280, %v280
        %v287 = vpack.c.b16 %v281, %v281
        %v288 = vpack.c.b16 %v282, %v282
        %v289 = vpack.c.b16 %v283, %v283
        %vm296 = vcmask 125952
        %297 = vst.msk [vmem:[#allocation2] sm:$0xf] %vm296, %v284
        %298 = vst.msk [vmem:[#allocation2 + $0x4] sm:$0xf] %vm296, %v285
        %299 = vst.msk [vmem:[#allocation2 + $0x8] sm:$0xf] %vm296, %v286
        %300 = vst.msk [vmem:[#allocation2 + $0xc] sm:$0xf] %vm296, %v287
        %301 = vst.msk [vmem:[#allocation2 + $0x10] sm:$0xf] %vm296, %v288
        %302 = vst.msk [vmem:[#allocation2 + $0x14] sm:$0xf] %vm296, %v289
        %v303 = vld [vmem:[%s2] sm:$0xf]
        %v304 = vld [vmem:[%s2 + $0x4] sm:$0xf]
        %v305 = vld [vmem:[#allocation2] sm:$0xf]
        %v306 = vld [vmem:[#allocation2 + $0x4] sm:$0xf]
        %v309 = vunpack.c.l.b16 %v303
        %v310 = vunpack.c.l.b16 %v304
        %v311 = vpack.c.b16 %v310, %v309
        %v314 = vunpack.c.l.b16 %v305
        %v315 = vunpack.c.l.b16 %v306
        %v316 = vpack.c.b16 %v315, %v314
        %v319 = vsel %vm205, %v311, 0
        %321 = vmatprep.subr.bf16.mxu0 0
        %322 = vmatpush1.bf16.msra.mxu0 0
        %323 = vmatprep.subr.bf16.mxu0 0
        %324 = vmatpush1.bf16.msra.mxu0 0
        %325 = vmatprep.subr.bf16.mxu0 0
        %326 = vmatpush1.bf16.msra.mxu0 0
        %327 = vmatprep.subr.bf16.mxu0 0
        %328 = vmatpush1.bf16.msra.mxu0 0
        %329 = vmatprep.subr.bf16.mxu0 0
        %330 = vmatpush1.bf16.msra.mxu0 0
        %331 = vmatprep.subr.bf16.mxu0 0
        %332 = vmatpush1.bf16.msra.mxu0 0
        %333 = vmatprep.subr.bf16.mxu0 0
        %334 = vmatpush1.bf16.msra.mxu0 0
        %335 = vmatprep.subr.bf16.mxu0 0
        %336 = vmatpush1.bf16.msra.mxu0 %v316
        %337 = vmatprep.subr.bf16.mxu0 0
        %338 = vmatpush2.bf16.msra.mxu0 0
        %339 = vmatprep.subr.bf16.mxu0 0
        %340 = vmatpush2.bf16.msra.mxu0 0
        %341 = vmatprep.subr.bf16.mxu0 0
        %342 = vmatpush2.bf16.msra.mxu0 0
        %343 = vmatprep.subr.bf16.mxu0 0
        %344 = vmatpush2.bf16.msra.mxu0 0
        %345 = vmatprep.subr.bf16.mxu0 0
        %346 = vmatpush2.bf16.msra.mxu0 0
        %347 = vmatprep.subr.bf16.mxu0 0
        %348 = vmatpush2.bf16.msra.mxu0 0
        %349 = vmatprep.subr.bf16.mxu0 0
        %350 = vmatpush2.bf16.msra.mxu0 0
        %351 = vmatprep.subr.bf16.mxu0 0
        %352 = vmatpush2.bf16.msra.mxu0 0
        %353 = vmatprep.mubr.bf16.mxu0 0
        %354 = vmatmul.mubr.bf16.gmra.mxu0 %v319
        %v355 = vpop.f32.mrf.mxu0
        %v356 = vadd.f32 0.0, %v355
        %v357 = vpop.f32.mrf.mxu0
        %v358 = vpop.f32.mrf.mxu0
        %v359 = vadd.f32 0.0, %v358
        %v360 = vpop.f32.mrf.mxu0
        %361 = vdwg.mxu0
        %362 = vst.msk [vmem:[%s166] sm:$0xff] %vm205, %v356
        %363 = vst.msk [vmem:[%s166 + $0x8] sm:$0xff] %vm205, %v359
        %s364 = scalar_lea.vmem [#allocation2], 8
        %v365 = vld [vmem:[%s364] sm:$0xf]
        %v366 = vld [vmem:[%s364 + $0x4] sm:$0xf]
        %v369 = vunpack.c.l.b16 %v365
        %v370 = vunpack.c.l.b16 %v366
        %v371 = vpack.c.b16 %v370, %v369
        %373 = vmatprep.subr.bf16.mxu0 0
        %374 = vmatpush1.bf16.msra.mxu0 0
        %375 = vmatprep.subr.bf16.mxu0 0
        %376 = vmatpush1.bf16.msra.mxu0 0
        %377 = vmatprep.subr.bf16.mxu0 0
        %378 = vmatpush1.bf16.msra.mxu0 0
        %379 = vmatprep.subr.bf16.mxu0 0
        %380 = vmatpush1.bf16.msra.mxu0 0
        %381 = vmatprep.subr.bf16.mxu0 0
        %382 = vmatpush1.bf16.msra.mxu0 0
        %383 = vmatprep.subr.bf16.mxu0 0
        %384 = vmatpush1.bf16.msra.mxu0 0
        %385 = vmatprep.subr.bf16.mxu0 0
        %386 = vmatpush1.bf16.msra.mxu0 0
        %387 = vmatprep.subr.bf16.mxu0 0
        %388 = vmatpush1.bf16.msra.mxu0 %v371
        %389 = vmatprep.subr.bf16.mxu0 0
        %390 = vmatpush2.bf16.msra.mxu0 0
        %391 = vmatprep.subr.bf16.mxu0 0
        %392 = vmatpush2.bf16.msra.mxu0 0
        %393 = vmatprep.subr.bf16.mxu0 0
        %394 = vmatpush2.bf16.msra.mxu0 0
        %395 = vmatprep.subr.bf16.mxu0 0
        %396 = vmatpush2.bf16.msra.mxu0 0
        %397 = vmatprep.subr.bf16.mxu0 0
        %398 = vmatpush2.bf16.msra.mxu0 0
        %399 = vmatprep.subr.bf16.mxu0 0
        %400 = vmatpush2.bf16.msra.mxu0 0
        %401 = vmatprep.subr.bf16.mxu0 0
        %402 = vmatpush2.bf16.msra.mxu0 0
        %403 = vmatprep.subr.bf16.mxu0 0
        %404 = vmatpush2.bf16.msra.mxu0 0
        %405 = vmatprep.mubr.bf16.mxu0 0
        %406 = vmatmul.mubr.bf16.gmra.mxu0 %v319
        %v407 = vpop.f32.mrf.mxu0
        %v408 = vadd.f32 0.0, %v407
        %v409 = vpop.f32.mrf.mxu0
        %v410 = vpop.f32.mrf.mxu0
        %v411 = vadd.f32 0.0, %v410
        %v412 = vpop.f32.mrf.mxu0
        %413 = vdwg.mxu0
        %s414 = scalar_lea.vmem %s166, 16 [#allocation3]
        %415 = vst.msk [vmem:[%s414] sm:$0xff] %vm205, %v408
        %416 = vst.msk [vmem:[%s414 + $0x8] sm:$0xff] %vm205, %v411
        %s417 = scalar_lea.vmem [#allocation2], 16
        %v418 = vld [vmem:[%s417] sm:$0xf]
        %v419 = vld [vmem:[%s417 + $0x4] sm:$0xf]
        %v422 = vunpack.c.l.b16 %v418
        %v423 = vunpack.c.l.b16 %v419
        %v424 = vpack.c.b16 %v423, %v422
        %426 = vmatprep.subr.bf16.mxu0 0
        %427 = vmatpush1.bf16.msra.mxu0 0
        %428 = vmatprep.subr.bf16.mxu0 0
        %429 = vmatpush1.bf16.msra.mxu0 0
        %430 = vmatprep.subr.bf16.mxu0 0
        %431 = vmatpush1.bf16.msra.mxu0 0
        %432 = vmatprep.subr.bf16.mxu0 0
        %433 = vmatpush1.bf16.msra.mxu0 0
        %434 = vmatprep.subr.bf16.mxu0 0
        %435 = vmatpush1.bf16.msra.mxu0 0
        %436 = vmatprep.subr.bf16.mxu0 0
        %437 = vmatpush1.bf16.msra.mxu0 0
        %438 = vmatprep.subr.bf16.mxu0 0
        %439 = vmatpush1.bf16.msra.mxu0 0
        %440 = vmatprep.subr.bf16.mxu0 0
        %441 = vmatpush1.bf16.msra.mxu0 %v424
        %442 = vmatprep.subr.bf16.mxu0 0
        %443 = vmatpush2.bf16.msra.mxu0 0
        %444 = vmatprep.subr.bf16.mxu0 0
        %445 = vmatpush2.bf16.msra.mxu0 0
        %446 = vmatprep.subr.bf16.mxu0 0
        %447 = vmatpush2.bf16.msra.mxu0 0
        %448 = vmatprep.subr.bf16.mxu0 0
        %449 = vmatpush2.bf16.msra.mxu0 0
        %450 = vmatprep.subr.bf16.mxu0 0
        %451 = vmatpush2.bf16.msra.mxu0 0
        %452 = vmatprep.subr.bf16.mxu0 0
        %453 = vmatpush2.bf16.msra.mxu0 0
        %454 = vmatprep.subr.bf16.mxu0 0
        %455 = vmatpush2.bf16.msra.mxu0 0
        %456 = vmatprep.subr.bf16.mxu0 0
        %457 = vmatpush2.bf16.msra.mxu0 0
        %458 = vmatprep.mubr.bf16.mxu0 0
        %459 = vmatmul.mubr.bf16.gmra.mxu0 %v319
        %v460 = vpop.f32.mrf.mxu0
        %v461 = vadd.f32 0.0, %v460
        %v462 = vpop.f32.mrf.mxu0
        %v463 = vpop.f32.mrf.mxu0
        %v464 = vadd.f32 0.0, %v463
        %v465 = vpop.f32.mrf.mxu0
        %466 = vdwg.mxu0
        %s467 = scalar_lea.vmem %s166, 32 [#allocation3]
        %468 = vst.msk [vmem:[%s467] sm:$0xff] %vm205, %v461
        %469 = vst.msk [vmem:[%s467 + $0x8] sm:$0xff] %vm205, %v464
        %s470 = sand.u32 %s93, 1
        %s471 = scalar_lea.sflag [#allocation4], %s470
        %s472 = sand.u32 %s93, 1
        %s473 = smul.addr %s472, 48
        %s474 = scalar_lea.vmem [#allocation3], %s473
        // Predicated region
        $region33: #{gaussian_blur.1} parent=31 // pred_check
          %p475 = pneg %p103
        $region34: #{gaussian_blur.1} parent=31 // pred_check_branch
          %477 = sbr.rel (%p475) target = $region36
        $region35: #{gaussian_blur.1} parent=31 // pred_region
          %s478 = smul.u32 3, %s17
          %s480 = ssub.s32 768, 768
          %481 = vsyncadd %s471, %s480
          %s482 = smul.addr %s478, 2
          %s483 = smul.addr %s482, 128
          %s484 = scalar_lea.hbm %s3, %s483
          %s485 = sshll.u32 %s474, 4
          %s486 = int_to_ptr.vmem [resolvable:$true] %s485
          %491 = dma.vmem_to_hbm [thread:$0]  %s486, 768, %s484, %s471, 128, 128, 8
        $region36: #{gaussian_blur.1} parent=31 // pred_fallthru
          _
      $region32: #{gaussian_blur.1} parent=5 // pred_fallthru
        _
      %p492 = scmp.le.s32.totalorder 2, %s12
      // Predicated region
      $region37: #{gaussian_blur.1} parent=5 // pred_check
        %p493 = pneg %p492
      $region38: #{gaussian_blur.1} parent=5 // pred_check_branch
        %495 = sbr.rel (%p493) target = $region40
      $region39: #{gaussian_blur.1} parent=5 // pred_region
        %s496 = ssub.s32 %s12, 2
        // Predicated region
        $region41: #{gaussian_blur.1} parent=39 // pred_check
          %p497 = pneg %p109
        $region42: #{gaussian_blur.1} parent=39 // pred_check_branch
          %499 = sbr.rel (%p497) target = $region44
        $region43: #{gaussian_blur.1} parent=39 // pred_region
          %s500 = sand.u32 %s94, 1
          %s501 = scalar_lea.sflag [#allocation4], %s500
          %s502 = sand.u32 %s94, 1
          %s503 = smul.addr %s502, 48
          %s504 = scalar_lea.vmem [#allocation3], %s503
          %505 = dma.done %s501, 768
        $region44: #{gaussian_blur.1} parent=39 // pred_fallthru
          _
      $region40: #{gaussian_blur.1} parent=5 // pred_fallthru
        _
    $region6: #{gaussian_blur.1} parent=1 // loop_footer
      %s16 = sadd.s32 1, %s12
    $region7: #{gaussian_blur.1} parent=1 // loop_footer_branch
      %11 = sbr.rel target = $region3
    $region8: #{gaussian_blur.1} parent=1 // loop_exit
      _
    %506 = vsyncpa [#allocation4], 1
    %s507 = scalar_lea.sflag [#allocation4], 1
    %508 = vsyncpa %s507, 1

</llo_original>
